<compile_context>
chip_gen: v6e
topology: v6e:2x2x1
jax: 0.10.0
libtpu: 0.0.40
codegen_flags: <defaults>
</compile_context>

<pallas_src>
import jax
import jax.numpy as jnp
import numpy as np
from jax.experimental import pallas as pl
from jax.experimental.pallas import tpu as pltpu


def _ensemble_barrier_kernel(
    s_ref,      # (TB, S)        states tile
    a_ref,      # (TB, A)        actions tile
    w1s_ref,    # (S, E*H)       elite layer-1 weights (state rows), feature-concatenated
    w1a_ref,    # (A, E*H)       elite layer-1 weights (action rows)
    b1_ref,     # (1, E*H)
    w2_ref,     # (E*H, E*S)     block-diagonal mean-head weights
    b2_ref,     # (1, E*S)
    wb1_ref,    # (E*S, E*HB)    block-diag-repeated barrier layer-1 (shared weights)
    bb1_ref,    # (1, E*HB)
    wsel_ref,   # (E*HB, E)      barrier output head wb2 folded into block-diag selector
    out_ref,    # (TB, 1)        max over elites (bb2 added outside)
):
    # Fused layer 1 for all elites: relu([states|actions] @ W1_cat + b1_cat).
    h = jnp.maximum(
        jnp.dot(s_ref[...], w1s_ref[...], preferred_element_type=jnp.float32)
        + jnp.dot(a_ref[...], w1a_ref[...], preferred_element_type=jnp.float32)
        + b1_ref[...],
        0.0,
    )                                                               # (TB, E*H)

    # Fused mean heads (block-diagonal): per-elite next_states, side by side on lanes.
    mean = jnp.dot(h, w2_ref[...], preferred_element_type=jnp.float32) + b2_ref[...]
    # method == 'max-mean': next_states = mean (stddev head not needed)

    # Fused barrier layer 1 (same wb1 in every diagonal block).
    bh = jnp.maximum(
        jnp.dot(mean, wb1_ref[...], preferred_element_type=jnp.float32) + bb1_ref[...],
        0.0,
    )                                                               # (TB, E*HB)

    # Barrier output heads: wb2 folded into the block-diag selector -> one (E*HB, E) matmul.
    nh_all = jnp.dot(bh, wsel_ref[...], preferred_element_type=jnp.float32)  # (TB, E)

    # max over ensemble members (tiny lane reduction on the XLU).
    out_ref[...] = jnp.max(nh_all, axis=-1, keepdims=True)


def _pick_batch_tile(B):
    """Single grid step for small batches; tile (and shard across TCs) for large ones."""
    if B <= 1024:
        return B
    for tb in (1024, 512, 256, 128, 64, 32, 16, 8):
        if B % tb == 0:
            return tb
    return B


def ensemble_uncertainty_forward(states, actions, params, elites):
    """states: (B, S) f32, actions: (B, A) f32.  Returns nh: (B,) f32."""
    B, S = states.shape
    A = actions.shape[1]
    elites = tuple(int(e) for e in elites)   # compile-time constants -> static slices
    E = len(elites)

    w1 = params["w1"]    # (M, S+A, H)
    b1 = params["b1"]    # (M, H)
    w2 = params["w2"]    # (M, H, S)
    b2 = params["b2"]    # (M, S)
    wb1 = params["wb1"]  # (S, HB)
    bb1 = params["bb1"]  # (HB,)
    wb2 = params["wb2"]  # (HB, 1)
    bb2 = params["bb2"]  # (1,)

    H = w1.shape[2]
    HB = wb1.shape[1]

    # --- Trace-time fusion of the E elites into one matmul chain (static elite gather) ---
    w1_e = jnp.stack([w1[i] for i in elites], axis=0)                       # (E, D, H)
    w1s_cat = jnp.transpose(w1_e[:, :S, :], (1, 0, 2)).reshape(S, E * H)    # (S, E*H)
    w1a_cat = jnp.transpose(w1_e[:, S:, :], (1, 0, 2)).reshape(A, E * H)    # (A, E*H)
    b1_cat = jnp.stack([b1[i] for i in elites], axis=0).reshape(1, E * H)   # (1, E*H)

    w2_cat = jax.scipy.linalg.block_diag(*[w2[i] for i in elites])          # (E*H, E*S)
    b2_cat = jnp.stack([b2[i] for i in elites], axis=0).reshape(1, E * S)   # (1, E*S)

    wb1_cat = jax.scipy.linalg.block_diag(*([wb1] * E))                     # (E*S, E*HB)
    bb1_cat = jnp.tile(bb1[None, :], (1, E))                                # (1, E*HB)
    wsel = jax.scipy.linalg.block_diag(*([wb2] * E))                        # (E*HB, E)

    TB = _pick_batch_tile(B)
    grid = (B // TB,)

    out = pl.pallas_call(
        _ensemble_barrier_kernel,
        out_shape=jax.ShapeDtypeStruct((B, 1), jnp.float32),
        grid_spec=pltpu.PrefetchScalarGridSpec(
            num_scalar_prefetch=0,
            grid=grid,
            in_specs=[
                pl.BlockSpec((TB, S), lambda i: (i, 0)),           # states tile
                pl.BlockSpec((TB, A), lambda i: (i, 0)),           # actions tile
                pl.BlockSpec((S, E * H), lambda i: (0, 0)),        # W1 (state rows)
                pl.BlockSpec((A, E * H), lambda i: (0, 0)),        # W1 (action rows)
                pl.BlockSpec((1, E * H), lambda i: (0, 0)),        # b1
                pl.BlockSpec((E * H, E * S), lambda i: (0, 0)),    # W2 block-diag
                pl.BlockSpec((1, E * S), lambda i: (0, 0)),        # b2
                pl.BlockSpec((E * S, E * HB), lambda i: (0, 0)),   # wb1 block-diag
                pl.BlockSpec((1, E * HB), lambda i: (0, 0)),       # bb1
                pl.BlockSpec((E * HB, E), lambda i: (0, 0)),       # wb2 selector
            ],
            out_specs=pl.BlockSpec((TB, 1), lambda i: (i, 0)),
        ),
        compiler_params=pltpu.CompilerParams(
            dimension_semantics=("parallel",),
        ),
    )(states, actions, w1s_cat, w1a_cat, b1_cat, w2_cat, b2_cat, wb1_cat, bb1_cat, wsel)

    # bb2 is a constant added to every elite's scalar output: max(a_e + c) == max(a_e) + c.
    return out[:, 0] + bb2[0]   # (B,)  == all_nh.max(dim=0).values


def _reference_forward(states, actions, params, elites):
    """Pure-JAX reference replicating the PyTorch module (method='max-mean')."""
    x = jnp.concatenate([states, actions], axis=-1)
    all_nh = []
    for idx in elites:
        h = jnp.maximum(x @ params["w1"][idx] + params["b1"][idx], 0.0)
        mean = h @ params["w2"][idx] + params["b2"][idx]
        next_states = mean
        bh = jnp.maximum(next_states @ params["wb1"] + params["bb1"], 0.0)
        nh = bh @ params["wb2"] + params["bb2"]
        all_nh.append(nh[:, 0])
    return jnp.max(jnp.stack(all_nh, axis=0), axis=0)


def _init_params(key, n_models, S, A, H, HB):
    ks = jax.random.split(key, 8)
    D = S + A
    scale = 0.1
    return {
        "w1": scale * jax.random.normal(ks[0], (n_models, D, H), jnp.float32),
        "b1": scale * jax.random.normal(ks[1], (n_models, H), jnp.float32),
        "w2": scale * jax.random.normal(ks[2], (n_models, H, S), jnp.float32),
        "b2": scale * jax.random.normal(ks[3], (n_models, S), jnp.float32),
        "wb1": scale * jax.random.normal(ks[4], (S, HB), jnp.float32),
        "bb1": scale * jax.random.normal(ks[5], (HB,), jnp.float32),
        "wb2": scale * jax.random.normal(ks[6], (HB, 1), jnp.float32),
        "bb2": scale * jax.random.normal(ks[7], (1,), jnp.float32),
    }


if __name__ == "__main__":
    # Small, deterministic setup consistent with the module's forward:
    # batch=8, state_dim=16, action_dim=8, hidden=32, 5-model ensemble, 3 elites.
    B, S, A, H, HB = 8, 16, 8, 32, 32
    n_models = 5
    elites = (0, 2, 4)

    key = jax.random.PRNGKey(0)
    k_s, k_a, k_p = jax.random.split(key, 3)
    states = jax.random.normal(k_s, (B, S), jnp.float32)
    actions = jax.random.normal(k_a, (B, A), jnp.float32)
    params = _init_params(k_p, n_models, S, A, H, HB)

    nh = jax.block_until_ready(
        ensemble_uncertainty_forward(states, actions, params, elites)
    )
    ref = jax.block_until_ready(_reference_forward(states, actions, params, elites))

    np.testing.assert_allclose(np.asarray(nh), np.asarray(ref), rtol=1e-3, atol=1e-3)
    assert nh.shape == (B,)
    print("KERNEL_OK")
</pallas_src>

<mosaic_0001>
module attributes {stable_mosaic.version = 11 : i64} {
  func.func @_ensemble_barrier_kernel(%arg0: i32, %arg1: memref<8x16xf32, #tpu.memory_space<vmem>>, %arg2: memref<8x8xf32, #tpu.memory_space<vmem>>, %arg3: memref<16x96xf32, #tpu.memory_space<vmem>>, %arg4: memref<8x96xf32, #tpu.memory_space<vmem>>, %arg5: memref<1x96xf32, #tpu.memory_space<vmem>>, %arg6: memref<96x48xf32, #tpu.memory_space<vmem>>, %arg7: memref<1x48xf32, #tpu.memory_space<vmem>>, %arg8: memref<48x96xf32, #tpu.memory_space<vmem>>, %arg9: memref<1x96xf32, #tpu.memory_space<vmem>>, %arg10: memref<96x3xf32, #tpu.memory_space<vmem>>, %arg11: memref<8x1xf32, #tpu.memory_space<vmem>>) attributes {dimension_semantics = [#tpu.dimension_semantics<parallel>], iteration_bounds = array<i64: 1>, scalar_prefetch = 0 : i64, scratch_operands = 0 : i64, tpu.core_type = #tpu.core_type<tc>, window_params = [{transform_indices = @transform_0, window_bounds = array<i64: 8, 16>}, {transform_indices = @transform_1, window_bounds = array<i64: 8, 8>}, {pipeline_mode = #tpu.pipeline_mode<synchronous>, transform_indices = @transform_2, window_bounds = array<i64: 16, 96>}, {pipeline_mode = #tpu.pipeline_mode<synchronous>, transform_indices = @transform_3, window_bounds = array<i64: 8, 96>}, {pipeline_mode = #tpu.pipeline_mode<synchronous>, transform_indices = @transform_4, window_bounds = array<i64: 1, 96>}, {pipeline_mode = #tpu.pipeline_mode<synchronous>, transform_indices = @transform_5, window_bounds = array<i64: 96, 48>}, {pipeline_mode = #tpu.pipeline_mode<synchronous>, transform_indices = @transform_6, window_bounds = array<i64: 1, 48>}, {pipeline_mode = #tpu.pipeline_mode<synchronous>, transform_indices = @transform_7, window_bounds = array<i64: 48, 96>}, {pipeline_mode = #tpu.pipeline_mode<synchronous>, transform_indices = @transform_8, window_bounds = array<i64: 1, 96>}, {pipeline_mode = #tpu.pipeline_mode<synchronous>, transform_indices = @transform_9, window_bounds = array<i64: 96, 3>}, {transform_indices = @transform_10, window_bounds = array<i64: 8, 1>}]} {
    %c0 = arith.constant 0 : index
    %c0_0 = arith.constant 0 : index
    %0 = vector.load %arg1[%c0, %c0_0] : memref<8x16xf32, #tpu.memory_space<vmem>>, vector<8x16xf32>
    %c0_1 = arith.constant 0 : index
    %c0_2 = arith.constant 0 : index
    %1 = vector.load %arg3[%c0_1, %c0_2] : memref<16x96xf32, #tpu.memory_space<vmem>>, vector<16x96xf32>
    %cst = arith.constant dense<0.000000e+00> : vector<8x96xf32>
    %2 = tpu.matmul %0, %1, %cst {dimension_numbers = #tpu.dot_dimension_numbers<[1], [0], [0], [1], [0, 0, 1, 1], [], []>} : vector<8x16xf32>, vector<16x96xf32>, vector<8x96xf32> -> vector<8x96xf32>
    %c0_3 = arith.constant 0 : index
    %c0_4 = arith.constant 0 : index
    %3 = vector.load %arg2[%c0_3, %c0_4] : memref<8x8xf32, #tpu.memory_space<vmem>>, vector<8x8xf32>
    %c0_5 = arith.constant 0 : index
    %c0_6 = arith.constant 0 : index
    %4 = vector.load %arg4[%c0_5, %c0_6] : memref<8x96xf32, #tpu.memory_space<vmem>>, vector<8x96xf32>
    %cst_7 = arith.constant dense<0.000000e+00> : vector<8x96xf32>
    %5 = tpu.matmul %3, %4, %cst_7 {dimension_numbers = #tpu.dot_dimension_numbers<[1], [0], [0], [1], [0, 0, 1, 1], [], []>} : vector<8x8xf32>, vector<8x96xf32>, vector<8x96xf32> -> vector<8x96xf32>
    %6 = arith.addf %2, %5 : vector<8x96xf32>
    %c0_8 = arith.constant 0 : index
    %c0_9 = arith.constant 0 : index
    %7 = vector.load %arg5[%c0_8, %c0_9] : memref<1x96xf32, #tpu.memory_space<vmem>>, vector<1x96xf32>
    %8 = vector.broadcast %7 : vector<1x96xf32> to vector<8x96xf32>
    %9 = arith.addf %6, %8 : vector<8x96xf32>
    %cst_10 = arith.constant 0.000000e+00 : f32
    %10 = vector.broadcast %cst_10 : f32 to vector<8x96xf32>
    %11 = arith.maximumf %9, %10 : vector<8x96xf32>
    %c0_11 = arith.constant 0 : index
    %c0_12 = arith.constant 0 : index
    %12 = vector.load %arg6[%c0_11, %c0_12] : memref<96x48xf32, #tpu.memory_space<vmem>>, vector<96x48xf32>
    %cst_13 = arith.constant dense<0.000000e+00> : vector<8x48xf32>
    %13 = tpu.matmul %11, %12, %cst_13 {dimension_numbers = #tpu.dot_dimension_numbers<[1], [0], [0], [1], [0, 0, 1, 1], [], []>} : vector<8x96xf32>, vector<96x48xf32>, vector<8x48xf32> -> vector<8x48xf32>
    %c0_14 = arith.constant 0 : index
    %c0_15 = arith.constant 0 : index
    %14 = vector.load %arg7[%c0_14, %c0_15] : memref<1x48xf32, #tpu.memory_space<vmem>>, vector<1x48xf32>
    %15 = vector.broadcast %14 : vector<1x48xf32> to vector<8x48xf32>
    %16 = arith.addf %13, %15 : vector<8x48xf32>
    %c0_16 = arith.constant 0 : index
    %c0_17 = arith.constant 0 : index
    %17 = vector.load %arg8[%c0_16, %c0_17] : memref<48x96xf32, #tpu.memory_space<vmem>>, vector<48x96xf32>
    %cst_18 = arith.constant dense<0.000000e+00> : vector<8x96xf32>
    %18 = tpu.matmul %16, %17, %cst_18 {dimension_numbers = #tpu.dot_dimension_numbers<[1], [0], [0], [1], [0, 0, 1, 1], [], []>} : vector<8x48xf32>, vector<48x96xf32>, vector<8x96xf32> -> vector<8x96xf32>
    %c0_19 = arith.constant 0 : index
    %c0_20 = arith.constant 0 : index
    %19 = vector.load %arg9[%c0_19, %c0_20] : memref<1x96xf32, #tpu.memory_space<vmem>>, vector<1x96xf32>
    %20 = vector.broadcast %19 : vector<1x96xf32> to vector<8x96xf32>
    %21 = arith.addf %18, %20 : vector<8x96xf32>
    %cst_21 = arith.constant 0.000000e+00 : f32
    %22 = vector.broadcast %cst_21 : f32 to vector<8x96xf32>
    %23 = arith.maximumf %21, %22 : vector<8x96xf32>
    %c0_22 = arith.constant 0 : index
    %c0_23 = arith.constant 0 : index
    %24 = vector.load %arg10[%c0_22, %c0_23] : memref<96x3xf32, #tpu.memory_space<vmem>>, vector<96x3xf32>
    %cst_24 = arith.constant dense<0.000000e+00> : vector<8x3xf32>
    %25 = tpu.matmul %23, %24, %cst_24 {dimension_numbers = #tpu.dot_dimension_numbers<[1], [0], [0], [1], [0, 0, 1, 1], [], []>} : vector<8x96xf32>, vector<96x3xf32>, vector<8x3xf32> -> vector<8x3xf32>
    %cst_25 = arith.constant dense<0xFF800000> : vector<8xf32>
    %26 = vector.multi_reduction <maximumf>, %25, %cst_25 [1] : vector<8x3xf32> to vector<8xf32>
    %27 = vector.shape_cast %26 : vector<8xf32> to vector<8x1xf32>
    %c0_26 = arith.constant 0 : index
    %c0_27 = arith.constant 0 : index
    %28 = vector.load %arg11[%c0_26, %c0_27] : memref<8x1xf32, #tpu.memory_space<vmem>>, vector<8x1xf32>
    tpu.vector_store %arg11[%c0_26, %c0_27], %27 {strides = array<i32>} : memref<8x1xf32, #tpu.memory_space<vmem>>, vector<8x1xf32>,
    return
  }
  func.func @transform_0(%arg0: i32) -> (i32, i32) {
    %c0_i32 = arith.constant 0 : i32
    %c0_i32_0 = arith.constant 0 : i32
    return %arg0, %c0_i32 : i32, i32
  }
  func.func @transform_1(%arg0: i32) -> (i32, i32) {
    %c0_i32 = arith.constant 0 : i32
    %c0_i32_0 = arith.constant 0 : i32
    return %arg0, %c0_i32 : i32, i32
  }
  func.func @transform_2(%arg0: i32) -> (i32, i32) {
    %c0_i32 = arith.constant 0 : i32
    %c0_i32_0 = arith.constant 0 : i32
    %c0_i32_1 = arith.constant 0 : i32
    return %c0_i32, %c0_i32_0 : i32, i32
  }
  func.func @transform_3(%arg0: i32) -> (i32, i32) {
    %c0_i32 = arith.constant 0 : i32
    %c0_i32_0 = arith.constant 0 : i32
    %c0_i32_1 = arith.constant 0 : i32
    return %c0_i32, %c0_i32_0 : i32, i32
  }
  func.func @transform_4(%arg0: i32) -> (i32, i32) {
    %c0_i32 = arith.constant 0 : i32
    %c0_i32_0 = arith.constant 0 : i32
    %c0_i32_1 = arith.constant 0 : i32
    return %c0_i32, %c0_i32_0 : i32, i32
  }
  func.func @transform_5(%arg0: i32) -> (i32, i32) {
    %c0_i32 = arith.constant 0 : i32
    %c0_i32_0 = arith.constant 0 : i32
    %c0_i32_1 = arith.constant 0 : i32
    return %c0_i32, %c0_i32_0 : i32, i32
  }
  func.func @transform_6(%arg0: i32) -> (i32, i32) {
    %c0_i32 = arith.constant 0 : i32
    %c0_i32_0 = arith.constant 0 : i32
    %c0_i32_1 = arith.constant 0 : i32
    return %c0_i32, %c0_i32_0 : i32, i32
  }
  func.func @transform_7(%arg0: i32) -> (i32, i32) {
    %c0_i32 = arith.constant 0 : i32
    %c0_i32_0 = arith.constant 0 : i32
    %c0_i32_1 = arith.constant 0 : i32
    return %c0_i32, %c0_i32_0 : i32, i32
  }
  func.func @transform_8(%arg0: i32) -> (i32, i32) {
    %c0_i32 = arith.constant 0 : i32
    %c0_i32_0 = arith.constant 0 : i32
    %c0_i32_1 = arith.constant 0 : i32
    return %c0_i32, %c0_i32_0 : i32, i32
  }
  func.func @transform_9(%arg0: i32) -> (i32, i32) {
    %c0_i32 = arith.constant 0 : i32
    %c0_i32_0 = arith.constant 0 : i32
    %c0_i32_1 = arith.constant 0 : i32
    return %c0_i32, %c0_i32_0 : i32, i32
  }
  func.func @transform_10(%arg0: i32) -> (i32, i32) {
    %c0_i32 = arith.constant 0 : i32
    %c0_i32_0 = arith.constant 0 : i32
    return %arg0, %c0_i32 : i32, i32
  }
}

</mosaic_0001>

<llo_original>
// kernel: tpu_custom_call.1
$region0: #{tpu_custom_call.1}
  #allocation0 [shape = 'u32[]', space=smem, size = 0x4, offset = 0x4, fixed_abs, tag = 'smem constant byte address 0x4 - core index']
  #allocation1 [shape = 'u32[144,128]{1,0:T(1,128)}', space=vmem, size = 0x12000, scoped, tag = 'internal scratch']
  %s0 = inlined_call_operand.vmem [shape: f32[8,16], index: 0, kind: input, shape index: {}]
  %s1 = inlined_call_operand.vmem [shape: f32[8,8], index: 1, kind: input, shape index: {}]
  %s2 = inlined_call_operand.vmem [shape: f32[16,96], index: 2, kind: input, shape index: {}]
  %s3 = inlined_call_operand.vmem [shape: f32[8,96], index: 3, kind: input, shape index: {}]
  %s4 = inlined_call_operand.vmem [shape: f32[1,96], index: 4, kind: input, shape index: {}]
  %s5 = inlined_call_operand.vmem [shape: f32[96,48], index: 5, kind: input, shape index: {}]
  %s6 = inlined_call_operand.vmem [shape: f32[1,48], index: 6, kind: input, shape index: {}]
  %s7 = inlined_call_operand.vmem [shape: f32[48,96], index: 7, kind: input, shape index: {}]
  %s8 = inlined_call_operand.vmem [shape: f32[1,96], index: 8, kind: input, shape index: {}]
  %s9 = inlined_call_operand.vmem [shape: f32[96,3], index: 9, kind: input, shape index: {}]
  %s10 = inlined_call_operand.vmem [shape: f32[8,1], index: 10, kind: output, shape index: {}]
  %s11 = sld [smem:[#allocation0]]
  $region50: #{tpu_custom_call.1} parent=0
    _
  %s13 = ssub.s32 1, %s11
  %s14 = scalar_select 0, %s13, %s11
  // Predicated region
  $region2: #{tpu_custom_call.1} parent=0 // pred_check
    _
  $region3: #{tpu_custom_call.1} parent=0 // pred_check_branch
    %16 = sbr.rel (0) target = $region5
  $region4: #{tpu_custom_call.1} parent=0 // pred_region
    _
  $region5: #{tpu_custom_call.1} parent=0 // pred_fallthru
    _
  // Predicated region
  $region6: #{tpu_custom_call.1} parent=0 // pred_check
    _
  $region7: #{tpu_custom_call.1} parent=0 // pred_check_branch
    %18 = sbr.rel (0) target = $region9
  $region8: #{tpu_custom_call.1} parent=0 // pred_region
    _
  $region9: #{tpu_custom_call.1} parent=0 // pred_fallthru
    _
  // Predicated region
  $region10: #{tpu_custom_call.1} parent=0 // pred_check
    _
  $region11: #{tpu_custom_call.1} parent=0 // pred_check_branch
    %20 = sbr.rel (0) target = $region13
  $region12: #{tpu_custom_call.1} parent=0 // pred_region
    _
  $region13: #{tpu_custom_call.1} parent=0 // pred_fallthru
    _
  // Predicated region
  $region14: #{tpu_custom_call.1} parent=0 // pred_check
    _
  $region15: #{tpu_custom_call.1} parent=0 // pred_check_branch
    %22 = sbr.rel (0) target = $region17
  $region16: #{tpu_custom_call.1} parent=0 // pred_region
    _
  $region17: #{tpu_custom_call.1} parent=0 // pred_fallthru
    _
  // Predicated region
  $region18: #{tpu_custom_call.1} parent=0 // pred_check
    _
  $region19: #{tpu_custom_call.1} parent=0 // pred_check_branch
    %24 = sbr.rel (0) target = $region21
  $region20: #{tpu_custom_call.1} parent=0 // pred_region
    _
  $region21: #{tpu_custom_call.1} parent=0 // pred_fallthru
    _
  // Predicated region
  $region22: #{tpu_custom_call.1} parent=0 // pred_check
    _
  $region23: #{tpu_custom_call.1} parent=0 // pred_check_branch
    %26 = sbr.rel (0) target = $region25
  $region24: #{tpu_custom_call.1} parent=0 // pred_region
    _
  $region25: #{tpu_custom_call.1} parent=0 // pred_fallthru
    _
  // Predicated region
  $region26: #{tpu_custom_call.1} parent=0 // pred_check
    _
  $region27: #{tpu_custom_call.1} parent=0 // pred_check_branch
    %28 = sbr.rel (0) target = $region29
  $region28: #{tpu_custom_call.1} parent=0 // pred_region
    _
  $region29: #{tpu_custom_call.1} parent=0 // pred_fallthru
    _
  // Predicated region
  $region30: #{tpu_custom_call.1} parent=0 // pred_check
    _
  $region31: #{tpu_custom_call.1} parent=0 // pred_check_branch
    %30 = sbr.rel (0) target = $region33
  $region32: #{tpu_custom_call.1} parent=0 // pred_region
    _
  $region33: #{tpu_custom_call.1} parent=0 // pred_fallthru
    _
  // Predicated region
  $region34: #{tpu_custom_call.1} parent=0 // pred_check
    _
  $region35: #{tpu_custom_call.1} parent=0 // pred_check_branch
    %32 = sbr.rel (0) target = $region37
  $region36: #{tpu_custom_call.1} parent=0 // pred_region
    _
  $region37: #{tpu_custom_call.1} parent=0 // pred_fallthru
    _
  // Predicated region
  $region38: #{tpu_custom_call.1} parent=0 // pred_check
    _
  $region39: #{tpu_custom_call.1} parent=0 // pred_check_branch
    %34 = sbr.rel (0) target = $region41
  $region40: #{tpu_custom_call.1} parent=0 // pred_region
    _
  $region41: #{tpu_custom_call.1} parent=0 // pred_fallthru
    _
  %v35 = vld [vmem:[%s0] sm:$0xff]
  %v36 = vld [vmem:[%s2] sm:$0xff]
  %v37 = vld [vmem:[%s2 + $0x8] sm:$0xff]
  %v38 = vld [vmem:[%s1] sm:$0xff]
  %v39 = vld [vmem:[%s3] sm:$0xff]
  %vm40 = vcmask 64512
  %v42 = vsel %vm40, %v38, 0
  %44 = vmatprep.subr.mxu0 0.0
  %45 = vmatpush1.msra.mxu0 0.0
  %46 = vmatprep.subr.mxu0 0.0
  %47 = vmatpush1.msra.mxu0 0.0
  %48 = vmatprep.subr.mxu0 0.0
  %49 = vmatpush1.msra.mxu0 0.0
  %50 = vmatprep.subr.mxu0 0.0
  %51 = vmatpush1.msra.mxu0 0.0
  %52 = vmatprep.subr.mxu0 0.0
  %53 = vmatpush1.msra.mxu0 0.0
  %54 = vmatprep.subr.mxu0 0.0
  %55 = vmatpush1.msra.mxu0 0.0
  %56 = vmatprep.subr.mxu0 0.0
  %57 = vmatpush1.msra.mxu0 0.0
  %58 = vmatprep.subr.mxu0 0.0
  %59 = vmatpush1.msra.mxu0 0.0
  %60 = vmatprep.subr.mxu0 0.0
  %61 = vmatpush1.msra.mxu0 0.0
  %62 = vmatprep.subr.mxu0 0.0
  %63 = vmatpush1.msra.mxu0 0.0
  %64 = vmatprep.subr.mxu0 0.0
  %65 = vmatpush1.msra.mxu0 0.0
  %66 = vmatprep.subr.mxu0 0.0
  %67 = vmatpush1.msra.mxu0 0.0
  %68 = vmatprep.subr.mxu0 0.0
  %69 = vmatpush1.msra.mxu0 0.0
  %70 = vmatprep.subr.mxu0 0.0
  %71 = vmatpush1.msra.mxu0 0.0
  %72 = vmatprep.subr.mxu0 0.0
  %73 = vmatpush1.msra.mxu0 0.0
  %74 = vmatprep.subr.mxu0 0.0
  %75 = vmatpush1.msra.mxu0 %v39
  %76 = vmatprep.subr.mxu0 0.0
  %77 = vmatpush2.msra.mxu0 0.0
  %78 = vmatprep.subr.mxu0 0.0
  %79 = vmatpush2.msra.mxu0 0.0
  %80 = vmatprep.subr.mxu0 0.0
  %81 = vmatpush2.msra.mxu0 0.0
  %82 = vmatprep.subr.mxu0 0.0
  %83 = vmatpush2.msra.mxu0 0.0
  %84 = vmatprep.subr.mxu0 0.0
  %85 = vmatpush2.msra.mxu0 0.0
  %86 = vmatprep.subr.mxu0 0.0
  %87 = vmatpush2.msra.mxu0 0.0
  %88 = vmatprep.subr.mxu0 0.0
  %89 = vmatpush2.msra.mxu0 0.0
  %90 = vmatprep.subr.mxu0 0.0
  %91 = vmatpush2.msra.mxu0 0.0
  %92 = vmatprep.subr.mxu0 0.0
  %93 = vmatpush2.msra.mxu0 0.0
  %94 = vmatprep.subr.mxu0 0.0
  %95 = vmatpush2.msra.mxu0 0.0
  %96 = vmatprep.subr.mxu0 0.0
  %97 = vmatpush2.msra.mxu0 0.0
  %98 = vmatprep.subr.mxu0 0.0
  %99 = vmatpush2.msra.mxu0 0.0
  %100 = vmatprep.subr.mxu0 0.0
  %101 = vmatpush2.msra.mxu0 0.0
  %102 = vmatprep.subr.mxu0 0.0
  %103 = vmatpush2.msra.mxu0 0.0
  %104 = vmatprep.subr.mxu0 0.0
  %105 = vmatpush2.msra.mxu0 0.0
  %106 = vmatprep.subr.mxu0 0.0
  %107 = vmatpush2.msra.mxu0 0.0
  %108 = vmatprep.mubr.f32.mxu0 0.0
  %109 = vmatmul.mubr.f32.gmra.mxu0 %v42
  %v110 = vpop.f32.mrf.mxu0
  %v111 = vadd.f32 0.0, %v110
  %v112 = vpop.f32.mrf.mxu0
  %113 = vdwg.mxu0
  %vm114 = vcmask 130048
  %v116 = vsel %vm114, %v35, 0
  %118 = vmatprep.subr.mxu0 0.0
  %119 = vmatpush1.msra.mxu0 0.0
  %120 = vmatprep.subr.mxu0 0.0
  %121 = vmatpush1.msra.mxu0 0.0
  %122 = vmatprep.subr.mxu0 0.0
  %123 = vmatpush1.msra.mxu0 0.0
  %124 = vmatprep.subr.mxu0 0.0
  %125 = vmatpush1.msra.mxu0 0.0
  %126 = vmatprep.subr.mxu0 0.0
  %127 = vmatpush1.msra.mxu0 0.0
  %128 = vmatprep.subr.mxu0 0.0
  %129 = vmatpush1.msra.mxu0 0.0
  %130 = vmatprep.subr.mxu0 0.0
  %131 = vmatpush1.msra.mxu0 0.0
  %132 = vmatprep.subr.mxu0 0.0
  %133 = vmatpush1.msra.mxu0 0.0
  %134 = vmatprep.subr.mxu0 0.0
  %135 = vmatpush1.msra.mxu0 0.0
  %136 = vmatprep.subr.mxu0 0.0
  %137 = vmatpush1.msra.mxu0 0.0
  %138 = vmatprep.subr.mxu0 0.0
  %139 = vmatpush1.msra.mxu0 0.0
  %140 = vmatprep.subr.mxu0 0.0
  %141 = vmatpush1.msra.mxu0 0.0
  %142 = vmatprep.subr.mxu0 0.0
  %143 = vmatpush1.msra.mxu0 0.0
  %144 = vmatprep.subr.mxu0 0.0
  %145 = vmatpush1.msra.mxu0 0.0
  %146 = vmatprep.subr.mxu0 0.0
  %147 = vmatpush1.msra.mxu0 %v37
  %148 = vmatprep.subr.mxu0 0.0
  %149 = vmatpush1.msra.mxu0 %v36
  %150 = vmatprep.subr.mxu0 0.0
  %151 = vmatpush2.msra.mxu0 0.0
  %152 = vmatprep.subr.mxu0 0.0
  %153 = vmatpush2.msra.mxu0 0.0
  %154 = vmatprep.subr.mxu0 0.0
  %155 = vmatpush2.msra.mxu0 0.0
  %156 = vmatprep.subr.mxu0 0.0
  %157 = vmatpush2.msra.mxu0 0.0
  %158 = vmatprep.subr.mxu0 0.0
  %159 = vmatpush2.msra.mxu0 0.0
  %160 = vmatprep.subr.mxu0 0.0
  %161 = vmatpush2.msra.mxu0 0.0
  %162 = vmatprep.subr.mxu0 0.0
  %163 = vmatpush2.msra.mxu0 0.0
  %164 = vmatprep.subr.mxu0 0.0
  %165 = vmatpush2.msra.mxu0 0.0
  %166 = vmatprep.subr.mxu0 0.0
  %167 = vmatpush2.msra.mxu0 0.0
  %168 = vmatprep.subr.mxu0 0.0
  %169 = vmatpush2.msra.mxu0 0.0
  %170 = vmatprep.subr.mxu0 0.0
  %171 = vmatpush2.msra.mxu0 0.0
  %172 = vmatprep.subr.mxu0 0.0
  %173 = vmatpush2.msra.mxu0 0.0
  %174 = vmatprep.subr.mxu0 0.0
  %175 = vmatpush2.msra.mxu0 0.0
  %176 = vmatprep.subr.mxu0 0.0
  %177 = vmatpush2.msra.mxu0 0.0
  %178 = vmatprep.subr.mxu0 0.0
  %179 = vmatpush2.msra.mxu0 0.0
  %180 = vmatprep.subr.mxu0 0.0
  %181 = vmatpush2.msra.mxu0 0.0
  %182 = vmatprep.mubr.f32.mxu0 0.0
  %183 = vmatmul.mubr.f32.gmra.mxu0 %v116
  %v184 = vpop.f32.mrf.mxu0
  %v185 = vadd.f32 %v111, %v184
  %v186 = vpop.f32.mrf.mxu0
  %187 = vdwg.mxu0
  %v188 = vld [vmem:[%s4] sm:$0x1]
  %v190 = vlaneseq
  %v191 = vshrl.u32 %v190, 7
  %v192 = vsub.s32 0, %v191
  %v193 = vrot.slane %v188, %v192
  %v195 = vadd.f32 %v185, %v193
  %v196 = vmax.f32 %v195, 0.0
  %v197 = vld [vmem:[%s5] sm:$0xff]
  %v198 = vld [vmem:[%s5 + $0x8] sm:$0xff]
  %v199 = vld [vmem:[%s5 + $0x10] sm:$0xff]
  %v200 = vld [vmem:[%s5 + $0x18] sm:$0xff]
  %v201 = vld [vmem:[%s5 + $0x20] sm:$0xff]
  %v202 = vld [vmem:[%s5 + $0x28] sm:$0xff]
  %v203 = vld [vmem:[%s5 + $0x30] sm:$0xff]
  %v204 = vld [vmem:[%s5 + $0x38] sm:$0xff]
  %v205 = vld [vmem:[%s5 + $0x40] sm:$0xff]
  %v206 = vld [vmem:[%s5 + $0x48] sm:$0xff]
  %v207 = vld [vmem:[%s5 + $0x50] sm:$0xff]
  %v208 = vld [vmem:[%s5 + $0x58] sm:$0xff]
  %v209 = vld [vmem:[%s6] sm:$0x1]
  %v211 = vlaneseq
  %v212 = vshrl.u32 %v211, 7
  %v213 = vsub.s32 0, %v212
  %v214 = vrot.slane %v209, %v213
  %vm216 = vcmask 785408
  %v218 = vsel %vm216, %v196, 0
  %220 = vmatprep.subr.mxu0 0.0
  %221 = vmatpush1.msra.mxu0 0.0
  %222 = vmatprep.subr.mxu0 0.0
  %223 = vmatpush1.msra.mxu0 0.0
  %224 = vmatprep.subr.mxu0 0.0
  %225 = vmatpush1.msra.mxu0 0.0
  %226 = vmatprep.subr.mxu0 0.0
  %227 = vmatpush1.msra.mxu0 0.0
  %228 = vmatprep.subr.mxu0 0.0
  %229 = vmatpush1.msra.mxu0 %v208
  %230 = vmatprep.subr.mxu0 0.0
  %231 = vmatpush1.msra.mxu0 %v207
  %232 = vmatprep.subr.mxu0 0.0
  %233 = vmatpush1.msra.mxu0 %v206
  %234 = vmatprep.subr.mxu0 0.0
  %235 = vmatpush1.msra.mxu0 %v205
  %236 = vmatprep.subr.mxu0 0.0
  %237 = vmatpush1.msra.mxu0 %v204
  %238 = vmatprep.subr.mxu0 0.0
  %239 = vmatpush1.msra.mxu0 %v203
  %240 = vmatprep.subr.mxu0 0.0
  %241 = vmatpush1.msra.mxu0 %v202
  %242 = vmatprep.subr.mxu0 0.0
  %243 = vmatpush1.msra.mxu0 %v201
  %244 = vmatprep.subr.mxu0 0.0
  %245 = vmatpush1.msra.mxu0 %v200
  %246 = vmatprep.subr.mxu0 0.0
  %247 = vmatpush1.msra.mxu0 %v199
  %248 = vmatprep.subr.mxu0 0.0
  %249 = vmatpush1.msra.mxu0 %v198
  %250 = vmatprep.subr.mxu0 0.0
  %251 = vmatpush1.msra.mxu0 %v197
  %252 = vmatprep.subr.mxu0 0.0
  %253 = vmatpush2.msra.mxu0 0.0
  %254 = vmatprep.subr.mxu0 0.0
  %255 = vmatpush2.msra.mxu0 0.0
  %256 = vmatprep.subr.mxu0 0.0
  %257 = vmatpush2.msra.mxu0 0.0
  %258 = vmatprep.subr.mxu0 0.0
  %259 = vmatpush2.msra.mxu0 0.0
  %260 = vmatprep.subr.mxu0 0.0
  %261 = vmatpush2.msra.mxu0 0.0
  %262 = vmatprep.subr.mxu0 0.0
  %263 = vmatpush2.msra.mxu0 0.0
  %264 = vmatprep.subr.mxu0 0.0
  %265 = vmatpush2.msra.mxu0 0.0
  %266 = vmatprep.subr.mxu0 0.0
  %267 = vmatpush2.msra.mxu0 0.0
  %268 = vmatprep.subr.mxu0 0.0
  %269 = vmatpush2.msra.mxu0 0.0
  %270 = vmatprep.subr.mxu0 0.0
  %271 = vmatpush2.msra.mxu0 0.0
  %272 = vmatprep.subr.mxu0 0.0
  %273 = vmatpush2.msra.mxu0 0.0
  %274 = vmatprep.subr.mxu0 0.0
  %275 = vmatpush2.msra.mxu0 0.0
  %276 = vmatprep.subr.mxu0 0.0
  %277 = vmatpush2.msra.mxu0 0.0
  %278 = vmatprep.subr.mxu0 0.0
  %279 = vmatpush2.msra.mxu0 0.0
  %280 = vmatprep.subr.mxu0 0.0
  %281 = vmatpush2.msra.mxu0 0.0
  %282 = vmatprep.subr.mxu0 0.0
  %283 = vmatpush2.msra.mxu0 0.0
  %284 = vmatprep.mubr.f32.mxu0 0.0
  %285 = vmatmul.mubr.f32.gmra.mxu0 %v218
  %v286 = vpop.f32.mrf.mxu0
  %v287 = vadd.f32 %v214, %v286
  %v288 = vpop.f32.mrf.mxu0
  %289 = vdwg.mxu0
  %v290 = vld [vmem:[%s7] sm:$0xff]
  %v291 = vld [vmem:[%s7 + $0x8] sm:$0xff]
  %v292 = vld [vmem:[%s7 + $0x10] sm:$0xff]
  %v293 = vld [vmem:[%s7 + $0x18] sm:$0xff]
  %v294 = vld [vmem:[%s7 + $0x20] sm:$0xff]
  %v295 = vld [vmem:[%s7 + $0x28] sm:$0xff]
  %v296 = vld [vmem:[%s8] sm:$0x1]
  %v298 = vlaneseq
  %v299 = vshrl.u32 %v298, 7
  %v300 = vsub.s32 0, %v299
  %v301 = vrot.slane %v296, %v300
  %vm303 = vcmask 392192
  %v305 = vsel %vm303, %v287, 0
  %307 = vmatprep.subr.mxu0 0.0
  %308 = vmatpush1.msra.mxu0 0.0
  %309 = vmatprep.subr.mxu0 0.0
  %310 = vmatpush1.msra.mxu0 0.0
  %311 = vmatprep.subr.mxu0 0.0
  %312 = vmatpush1.msra.mxu0 0.0
  %313 = vmatprep.subr.mxu0 0.0
  %314 = vmatpush1.msra.mxu0 0.0
  %315 = vmatprep.subr.mxu0 0.0
  %316 = vmatpush1.msra.mxu0 0.0
  %317 = vmatprep.subr.mxu0 0.0
  %318 = vmatpush1.msra.mxu0 0.0
  %319 = vmatprep.subr.mxu0 0.0
  %320 = vmatpush1.msra.mxu0 0.0
  %321 = vmatprep.subr.mxu0 0.0
  %322 = vmatpush1.msra.mxu0 0.0
  %323 = vmatprep.subr.mxu0 0.0
  %324 = vmatpush1.msra.mxu0 0.0
  %325 = vmatprep.subr.mxu0 0.0
  %326 = vmatpush1.msra.mxu0 0.0
  %327 = vmatprep.subr.mxu0 0.0
  %328 = vmatpush1.msra.mxu0 %v295
  %329 = vmatprep.subr.mxu0 0.0
  %330 = vmatpush1.msra.mxu0 %v294
  %331 = vmatprep.subr.mxu0 0.0
  %332 = vmatpush1.msra.mxu0 %v293
  %333 = vmatprep.subr.mxu0 0.0
  %334 = vmatpush1.msra.mxu0 %v292
  %335 = vmatprep.subr.mxu0 0.0
  %336 = vmatpush1.msra.mxu0 %v291
  %337 = vmatprep.subr.mxu0 0.0
  %338 = vmatpush1.msra.mxu0 %v290
  %339 = vmatprep.subr.mxu0 0.0
  %340 = vmatpush2.msra.mxu0 0.0
  %341 = vmatprep.subr.mxu0 0.0
  %342 = vmatpush2.msra.mxu0 0.0
  %343 = vmatprep.subr.mxu0 0.0
  %344 = vmatpush2.msra.mxu0 0.0
  %345 = vmatprep.subr.mxu0 0.0
  %346 = vmatpush2.msra.mxu0 0.0
  %347 = vmatprep.subr.mxu0 0.0
  %348 = vmatpush2.msra.mxu0 0.0
  %349 = vmatprep.subr.mxu0 0.0
  %350 = vmatpush2.msra.mxu0 0.0
  %351 = vmatprep.subr.mxu0 0.0
  %352 = vmatpush2.msra.mxu0 0.0
  %353 = vmatprep.subr.mxu0 0.0
  %354 = vmatpush2.msra.mxu0 0.0
  %355 = vmatprep.subr.mxu0 0.0
  %356 = vmatpush2.msra.mxu0 0.0
  %357 = vmatprep.subr.mxu0 0.0
  %358 = vmatpush2.msra.mxu0 0.0
  %359 = vmatprep.subr.mxu0 0.0
  %360 = vmatpush2.msra.mxu0 0.0
  %361 = vmatprep.subr.mxu0 0.0
  %362 = vmatpush2.msra.mxu0 0.0
  %363 = vmatprep.subr.mxu0 0.0
  %364 = vmatpush2.msra.mxu0 0.0
  %365 = vmatprep.subr.mxu0 0.0
  %366 = vmatpush2.msra.mxu0 0.0
  %367 = vmatprep.subr.mxu0 0.0
  %368 = vmatpush2.msra.mxu0 0.0
  %369 = vmatprep.subr.mxu0 0.0
  %370 = vmatpush2.msra.mxu0 0.0
  %371 = vmatprep.mubr.f32.mxu0 0.0
  %372 = vmatmul.mubr.f32.gmra.mxu0 %v305
  %v373 = vpop.f32.mrf.mxu0
  %v374 = vadd.f32 %v301, %v373
  %v375 = vpop.f32.mrf.mxu0
  %376 = vdwg.mxu0
  %v377 = vmax.f32 %v374, 0.0
  %v378 = vld [vmem:[%s9] sm:$0xff]
  %v379 = vld [vmem:[%s9 + $0x8] sm:$0xff]
  %v380 = vld [vmem:[%s9 + $0x10] sm:$0xff]
  %v381 = vld [vmem:[%s9 + $0x18] sm:$0xff]
  %v382 = vld [vmem:[%s9 + $0x20] sm:$0xff]
  %v383 = vld [vmem:[%s9 + $0x28] sm:$0xff]
  %v384 = vld [vmem:[%s9 + $0x30] sm:$0xff]
  %v385 = vld [vmem:[%s9 + $0x38] sm:$0xff]
  %v386 = vld [vmem:[%s9 + $0x40] sm:$0xff]
  %v387 = vld [vmem:[%s9 + $0x48] sm:$0xff]
  %v388 = vld [vmem:[%s9 + $0x50] sm:$0xff]
  %v389 = vld [vmem:[%s9 + $0x58] sm:$0xff]
  %v391 = vsel %vm216, %v377, 0
  %393 = vmatprep.subr.mxu0 0.0
  %394 = vmatpush1.msra.mxu0 0.0
  %395 = vmatprep.subr.mxu0 0.0
  %396 = vmatpush1.msra.mxu0 0.0
  %397 = vmatprep.subr.mxu0 0.0
  %398 = vmatpush1.msra.mxu0 0.0
  %399 = vmatprep.subr.mxu0 0.0
  %400 = vmatpush1.msra.mxu0 0.0
  %401 = vmatprep.subr.mxu0 0.0
  %402 = vmatpush1.msra.mxu0 %v389
  %403 = vmatprep.subr.mxu0 0.0
  %404 = vmatpush1.msra.mxu0 %v388
  %405 = vmatprep.subr.mxu0 0.0
  %406 = vmatpush1.msra.mxu0 %v387
  %407 = vmatprep.subr.mxu0 0.0
  %408 = vmatpush1.msra.mxu0 %v386
  %409 = vmatprep.subr.mxu0 0.0
  %410 = vmatpush1.msra.mxu0 %v385
  %411 = vmatprep.subr.mxu0 0.0
  %412 = vmatpush1.msra.mxu0 %v384
  %413 = vmatprep.subr.mxu0 0.0
  %414 = vmatpush1.msra.mxu0 %v383
  %415 = vmatprep.subr.mxu0 0.0
  %416 = vmatpush1.msra.mxu0 %v382
  %417 = vmatprep.subr.mxu0 0.0
  %418 = vmatpush1.msra.mxu0 %v381
  %419 = vmatprep.subr.mxu0 0.0
  %420 = vmatpush1.msra.mxu0 %v380
  %421 = vmatprep.subr.mxu0 0.0
  %422 = vmatpush1.msra.mxu0 %v379
  %423 = vmatprep.subr.mxu0 0.0
  %424 = vmatpush1.msra.mxu0 %v378
  %425 = vmatprep.subr.mxu0 0.0
  %426 = vmatpush2.msra.mxu0 0.0
  %427 = vmatprep.subr.mxu0 0.0
  %428 = vmatpush2.msra.mxu0 0.0
  %429 = vmatprep.subr.mxu0 0.0
  %430 = vmatpush2.msra.mxu0 0.0
  %431 = vmatprep.subr.mxu0 0.0
  %432 = vmatpush2.msra.mxu0 0.0
  %433 = vmatprep.subr.mxu0 0.0
  %434 = vmatpush2.msra.mxu0 0.0
  %435 = vmatprep.subr.mxu0 0.0
  %436 = vmatpush2.msra.mxu0 0.0
  %437 = vmatprep.subr.mxu0 0.0
  %438 = vmatpush2.msra.mxu0 0.0
  %439 = vmatprep.subr.mxu0 0.0
  %440 = vmatpush2.msra.mxu0 0.0
  %441 = vmatprep.subr.mxu0 0.0
  %442 = vmatpush2.msra.mxu0 0.0
  %443 = vmatprep.subr.mxu0 0.0
  %444 = vmatpush2.msra.mxu0 0.0
  %445 = vmatprep.subr.mxu0 0.0
  %446 = vmatpush2.msra.mxu0 0.0
  %447 = vmatprep.subr.mxu0 0.0
  %448 = vmatpush2.msra.mxu0 0.0
  %449 = vmatprep.subr.mxu0 0.0
  %450 = vmatpush2.msra.mxu0 0.0
  %451 = vmatprep.subr.mxu0 0.0
  %452 = vmatpush2.msra.mxu0 0.0
  %453 = vmatprep.subr.mxu0 0.0
  %454 = vmatpush2.msra.mxu0 0.0
  %455 = vmatprep.subr.mxu0 0.0
  %456 = vmatpush2.msra.mxu0 0.0
  %457 = vmatprep.mubr.f32.mxu0 0.0
  %458 = vmatmul.mubr.f32.gmra.mxu0 %v391
  %v459 = vpop.f32.mrf.mxu0
  %v460 = vadd.f32 0.0, %v459
  %v461 = vpop.f32.mrf.mxu0
  %462 = vdwg.mxu0
  %vm463 = vcmask 23552
  %v464 = vsel %vm463, %v460, -inf
  %465 = vmax.xlane.f32.xlu0 %v464
  %v466 = vpop.xlane.xlu0 %465
  %vm467 = vcmask 7168
  %468 = vst.msk [vmem:[%s10] sm:$0xff] %vm467, %v466
  // Predicated region
  $region42: #{tpu_custom_call.1} parent=0 // pred_check
    _
  $region43: #{tpu_custom_call.1} parent=0 // pred_check_branch
    %470 = sbr.rel (0) target = $region45
  $region44: #{tpu_custom_call.1} parent=0 // pred_region
    _
  $region45: #{tpu_custom_call.1} parent=0 // pred_fallthru
    _
  // Predicated region
  $region46: #{tpu_custom_call.1} parent=0 // pred_check
    _
  $region47: #{tpu_custom_call.1} parent=0 // pred_check_branch
    %472 = sbr.rel (0) target = $region49
  $region48: #{tpu_custom_call.1} parent=0 // pred_region
    _
  $region49: #{tpu_custom_call.1} parent=0 // pred_fallthru
    _

</llo_original>
